<compile_context>
chip_gen: v7x
topology: tpu7x:2x2x1
jax: 0.10.0
libtpu: 0.0.40
codegen_flags: <defaults>
</compile_context>

<pallas_src>
import functools

import jax
import jax.numpy as jnp
from jax.experimental import pallas as pl
from jax.experimental.pallas import tpu as pltpu


def _conv_mm_bias_relu_kernel(a_ref, w_ref, b_ref, o_ref):
    """One (tn, sp_tile) NCHW-ordered output tile of one image: relu(W @ A + b).

    a_ref: (1, Kd, sp_tile)   im2col patches, contraction(feature)-major
    w_ref: (tn, Kd)           flattened conv weights (OC, C*K*K)
    b_ref: (tn, 1)            bias column (broadcasts over the spatial lanes)
    o_ref: (1, tn, sp_tile)   output tile, already channel-major (NCHW)
    """
    acc = jnp.dot(w_ref[...], a_ref[0], preferred_element_type=jnp.float32)
    acc = acc + b_ref[...]
    o_ref[0] = jnp.maximum(acc, 0.0).astype(o_ref.dtype)


def _pick_sp_tile(sp):
    """Spatial (OH*OW) tile: full extent when small, 128-multiple tiles when scaled up."""
    if sp <= 512:
        return sp, sp
    for cand in (2048, 1024, 512):
        if sp % cand == 0:
            return cand, sp
    padded = ((sp + 511) // 512) * 512
    return 512, padded


def conv_layer_forward(x, w, b, *, kernel_size=9):
    """Equivalent of PyTorch: F.relu(nn.Conv2d(C, OC, k, stride=1)(x)).

    x: (N, C, H, W) f32, w: (OC, C, K, K) f32 (PyTorch layout), b: (OC,) f32
    returns: (N, OC, OH, OW) with OH = H - K + 1, OW = W - K + 1.
    """
    N, C, H, W = x.shape
    OC, Cw, K, Kw = w.shape
    assert Cw == C and K == Kw == kernel_size
    OH, OW = H - K + 1, W - K + 1
    SP = OH * OW
    Kd = C * K * K

    # im2col as ONE fused XLA op, already in contraction-major (N, Kd, OH, OW) layout so
    # both the reshape below and the final output reshape are contiguous (no transposes).
    # Feature ordering is (c, ki, kj) with c slowest, matching w.reshape(OC, C*K*K);
    # validated for C > 1 in __main__.  precision=HIGHEST keeps the identity-filter gather
    # bit-exact in f32.
    # TODO(synk): for large H/W, fuse im2col into the Pallas kernel (pl.ANY x-ref +
    # in-kernel shifted slices) to remove the Kd-times-expanded HBM intermediate and this
    # gather conv entirely; and cast patches/w_mat to bfloat16 (keep f32 accumulation) for
    # ~2-3x MXU throughput at scaled sizes (needs looser test tolerances).
    patches = jax.lax.conv_general_dilated_patches(
        x, filter_shape=(K, K), window_strides=(1, 1), padding="VALID",
        dimension_numbers=("NCHW", "OIHW", "NCHW"),
        precision=jax.lax.Precision.HIGHEST)               # (N, Kd, OH, OW)
    patches = patches.reshape(N, Kd, SP)                   # contiguous, free

    w_mat = w.reshape(OC, Kd)                               # contiguous, free
    b_col = b.reshape(OC, 1)

    # tn = full OC (<= 256) -> one OC tile: matches the 256-wide MXU on v6e/v7x and avoids
    # serial-overhead steps on single-TC v5e/v6e.  Any grid split happens on the parallel
    # batch / spatial axes only.
    tn = 256 if (OC > 256 and OC % 256 == 0) else OC
    sp_tile, sp_pad = _pick_sp_tile(SP)
    if sp_pad != SP:                                        # no-op at benchmark size
        patches = jnp.pad(patches, ((0, 0), (0, 0), (0, sp_pad - SP)))

    grid = (N, OC // tn, sp_pad // sp_tile)
    flops = 2 * N * sp_pad * Kd * OC
    bytes_accessed = 4 * (N * Kd * sp_pad + OC * Kd + OC + N * OC * sp_pad)

    out = pl.pallas_call(
        _conv_mm_bias_relu_kernel,
        out_shape=jax.ShapeDtypeStruct((N, OC, sp_pad), jnp.float32),
        grid_spec=pltpu.PrefetchScalarGridSpec(
            num_scalar_prefetch=0,
            grid=grid,
            in_specs=[
                pl.BlockSpec((1, Kd, sp_tile), lambda n, j, s: (n, 0, s)),  # patches
                pl.BlockSpec((tn, Kd), lambda n, j, s: (j, 0)),             # weights
                pl.BlockSpec((tn, 1), lambda n, j, s: (j, 0)),              # bias
            ],
            out_specs=pl.BlockSpec((1, tn, sp_tile), lambda n, j, s: (n, j, s)),
        ),
        compiler_params=pltpu.CompilerParams(
            dimension_semantics=("parallel", "parallel", "parallel"),
        ),
        cost_estimate=pl.CostEstimate(
            flops=flops, transcendentals=0, bytes_accessed=bytes_accessed),
    )(patches, w_mat, b_col)

    if sp_pad != SP:
        out = out[:, :, :SP]
    return out.reshape(N, OC, OH, OW)                       # contiguous, free (NCHW)


def _reference_conv_relu(x, w, b):
    y = jax.lax.conv_general_dilated(
        x, w, window_strides=(1, 1), padding="VALID",
        dimension_numbers=("NCHW", "OIHW", "NCHW"),
        precision=jax.lax.Precision.HIGHEST)
    return jnp.maximum(y + b.reshape(1, -1, 1, 1), 0.0)


if __name__ == "__main__":
    key = jax.random.PRNGKey(0)

    # Case 1: module defaults (in_channels=1, out_channels=256, kernel_size=9).
    N, C, H, W, OC, K = 2, 1, 16, 16, 256, 9
    k1, k2, k3, key = jax.random.split(key, 4)
    bound = 1.0 / ((C * K * K) ** 0.5)
    x = jax.random.normal(k1, (N, C, H, W), dtype=jnp.float32)
    w = jax.random.uniform(k2, (OC, C, K, K), jnp.float32, -bound, bound)
    b = jax.random.uniform(k3, (OC,), jnp.float32, -bound, bound)

    fwd = jax.jit(functools.partial(conv_layer_forward, kernel_size=K))
    y = jax.block_until_ready(fwd(x, w, b))
    y_ref = _reference_conv_relu(x, w, b)
    assert y.shape == (N, OC, H - K + 1, W - K + 1)
    # Tolerance allows for MXU pass-count differences between the in-kernel dot and the
    # HIGHEST-precision XLA reference; ordering/semantics bugs would be O(1) off.
    assert jnp.allclose(y, y_ref, atol=2e-3, rtol=2e-3), \
        float(jnp.max(jnp.abs(y - y_ref)))

    # Case 2: multi-channel sanity check — validates the (c, ki, kj) patch-feature
    # ordering against w.reshape(OC, C*K*K) for C > 1 (review correctness concern).
    N2, C2, H2, W2, OC2, K2 = 2, 3, 12, 12, 64, 3
    k1, k2, k3, key = jax.random.split(key, 4)
    bound2 = 1.0 / ((C2 * K2 * K2) ** 0.5)
    x2 = jax.random.normal(k1, (N2, C2, H2, W2), dtype=jnp.float32)
    w2 = jax.random.uniform(k2, (OC2, C2, K2, K2), jnp.float32, -bound2, bound2)
    b2 = jax.random.uniform(k3, (OC2,), jnp.float32, -bound2, bound2)
    y2 = jax.block_until_ready(
        jax.jit(functools.partial(conv_layer_forward, kernel_size=K2))(x2, w2, b2))
    y2_ref = _reference_conv_relu(x2, w2, b2)
    assert jnp.allclose(y2, y2_ref, atol=2e-3, rtol=2e-3), \
        float(jnp.max(jnp.abs(y2 - y2_ref)))

    print("KERNEL_OK")
</pallas_src>

<mosaic_0001>
module attributes {stable_mosaic.version = 11 : i64} {
  func.func @_conv_mm_bias_relu_kernel(%arg0: i32, %arg1: i32, %arg2: i32, %arg3: memref<1x81x64xf32, #tpu.memory_space<vmem>>, %arg4: memref<256x81xf32, #tpu.memory_space<vmem>>, %arg5: memref<256x1xf32, #tpu.memory_space<vmem>>, %arg6: memref<1x256x64xf32, #tpu.memory_space<vmem>>) attributes {dimension_semantics = [#tpu.dimension_semantics<parallel>, #tpu.dimension_semantics<parallel>, #tpu.dimension_semantics<parallel>], iteration_bounds = array<i64: 2, 1, 1>, scalar_prefetch = 0 : i64, scratch_operands = 0 : i64, tpu.core_type = #tpu.core_type<tc>, window_params = [{transform_indices = @transform_0, window_bounds = array<i64: 1, 81, 64>}, {transform_indices = @transform_1, window_bounds = array<i64: 256, 81>}, {transform_indices = @transform_2, window_bounds = array<i64: 256, 1>}, {transform_indices = @transform_3, window_bounds = array<i64: 1, 256, 64>}]} {
    %c0 = arith.constant 0 : index
    %c0_0 = arith.constant 0 : index
    %0 = vector.load %arg4[%c0, %c0_0] : memref<256x81xf32, #tpu.memory_space<vmem>>, vector<256x81xf32>
    %c0_1 = arith.constant 0 : index
    %c0_2 = arith.constant 0 : index
    %c0_3 = arith.constant 0 : index
    %1 = vector.load %arg3[%c0_1, %c0_2, %c0_3] : memref<1x81x64xf32, #tpu.memory_space<vmem>>, vector<1x81x64xf32>
    %2 = vector.shape_cast %1 : vector<1x81x64xf32> to vector<81x64xf32>
    %cst = arith.constant dense<0.000000e+00> : vector<256x64xf32>
    %3 = tpu.matmul %0, %2, %cst {dimension_numbers = #tpu.dot_dimension_numbers<[1], [0], [0], [1], [0, 0, 1, 1], [], []>} : vector<256x81xf32>, vector<81x64xf32>, vector<256x64xf32> -> vector<256x64xf32>
    %c0_4 = arith.constant 0 : index
    %c0_5 = arith.constant 0 : index
    %4 = vector.load %arg5[%c0_4, %c0_5] : memref<256x1xf32, #tpu.memory_space<vmem>>, vector<256x1xf32>
    %5 = vector.broadcast %4 : vector<256x1xf32> to vector<256x64xf32>
    %6 = arith.addf %3, %5 : vector<256x64xf32>
    %cst_6 = arith.constant 0.000000e+00 : f32
    %7 = vector.broadcast %cst_6 : f32 to vector<256x64xf32>
    %8 = arith.maximumf %6, %7 : vector<256x64xf32>
    %c0_7 = arith.constant 0 : index
    %c0_8 = arith.constant 0 : index
    %c0_9 = arith.constant 0 : index
    %9 = vector.load %arg6[%c0_7, %c0_8, %c0_9] : memref<1x256x64xf32, #tpu.memory_space<vmem>>, vector<1x256x64xf32>
    %10 = vector.shape_cast %9 : vector<1x256x64xf32> to vector<256x64xf32>
    %11 = vector.shape_cast %8 : vector<256x64xf32> to vector<1x256x64xf32>
    tpu.vector_store %arg6[%c0_7, %c0_8, %c0_9], %11 {strides = array<i32>} : memref<1x256x64xf32, #tpu.memory_space<vmem>>, vector<1x256x64xf32>,
    return
  }
  func.func @transform_0(%arg0: i32, %arg1: i32, %arg2: i32) -> (i32, i32, i32) {
    %c0_i32 = arith.constant 0 : i32
    %c0_i32_0 = arith.constant 0 : i32
    return %arg0, %c0_i32, %arg2 : i32, i32, i32
  }
  func.func @transform_1(%arg0: i32, %arg1: i32, %arg2: i32) -> (i32, i32) {
    %c0_i32 = arith.constant 0 : i32
    %c0_i32_0 = arith.constant 0 : i32
    return %arg1, %c0_i32 : i32, i32
  }
  func.func @transform_2(%arg0: i32, %arg1: i32, %arg2: i32) -> (i32, i32) {
    %c0_i32 = arith.constant 0 : i32
    %c0_i32_0 = arith.constant 0 : i32
    return %arg1, %c0_i32 : i32, i32
  }
  func.func @transform_3(%arg0: i32, %arg1: i32, %arg2: i32) -> (i32, i32, i32) {
    %c0_i32 = arith.constant 0 : i32
    return %arg0, %arg1, %arg2 : i32, i32, i32
  }
}

</mosaic_0001>

<llo_original>
// kernel: conv_layer_forward.1
$region0: #{conv_layer_forward.1}
  #allocation0 [shape = 'u32[]', space=smem, size = 0x4, offset = 0x4, fixed_abs, tag = 'smem constant byte address 0x4 - core index']
  #allocation1 [shape = 'u32[144,128]{1,0:T(1,128)}', space=vmem, size = 0x12000, scoped, tag = 'internal scratch']
  %s0 = inlined_call_operand.vmem [shape: f32[2,81,64], index: 0, kind: input, shape index: {}]
  %s1 = inlined_call_operand.vmem [shape: f32[256,81], index: 1, kind: input, shape index: {}]
  %s2 = inlined_call_operand.vmem [shape: f32[256,1], index: 2, kind: input, shape index: {}]
  %s3 = inlined_call_operand.vmem [shape: f32[2,256,64], index: 3, kind: output, shape index: {}]
  %s4 = sld [smem:[#allocation0]]
  $region45: #{conv_layer_forward.1} parent=0
    _
  %s6 = ssub.s32 1, %s4
  %s7 = scalar_select 0, %s6, %s4
  loop: start=0, step=1, limit=4
  $region2: #{conv_layer_forward.1} parent=0 // loop_pre_header
    _
  $region3: #{conv_layer_forward.1} parent=0 // loop_header
    %s9 = sphi 0, %s13
    %p10 = scmp.ge.s32.totalorder %s9, 4
    %s16 = sphi 0, %s35
    %s17 = sphi 0, %s31
    %s18 = sphi 0, %s27
    %s19 = sphi 0, %s16
    %s20 = sphi 0, %s17
    %s21 = sphi 0, %s18
    %s22 = sphi 0, %s19
    %s23 = sphi 0, %s20
    %s24 = sphi 0, %s21
    %s40 = sphi 0, %s42
    %s43 = sphi 0, %s40
    %s44 = sphi 0, %s43
    %s60 = sphi 0, %s44
    %s66 = sphi 0, %s68
    %s69 = sphi 0, %s66
    %s70 = sphi 0, %s69
    %s86 = sphi 0, %s70
    %s92 = sphi 0, %s94
    %s95 = sphi 0, %s92
    %s96 = sphi 0, %s95
    %s112 = sphi 0, %s96
    %s122 = sphi 0, %s124
    %s125 = sphi 0, %s122
    %s126 = sphi 0, %s125
    %s142 = sphi 0, %s126
  $region4: #{conv_layer_forward.1} parent=0 // loop_header_branch
    %12 = sbr.rel (%p10) target = $region8
  $region5: #{conv_layer_forward.1} parent=0 // loop_body
    %s14 = ssub.s32 %s9, 1
    %s15 = ssub.s32 %s9, 2
    %s25 = sadd.s32 1, %s18
    %p26 = scmp.ge.s32.totalorder %s25, 1
    %s27 = scalar_select %p26, 0, %s25
    %s28 = sadd.s32 1, %s17
    %s29 = scalar_select %p26, %s28, %s17
    %p30 = scmp.ge.s32.totalorder %s29, 1
    %s31 = scalar_select %p30, 0, %s29
    %s32 = sadd.s32 1, %s16
    %s33 = scalar_select %p30, %s32, %s16
    %p34 = scmp.ge.s32.totalorder %s33, 2
    %s35 = scalar_select %p34, 0, %s33
    %s36 = ssub.s32 %s16, %s35
    %s37 = ssub.s32 %s18, %s27
    %s38 = sor.u32 %s36, %s37
    %p39 = scmp.eq.s32.totalorder %s38, 0
    %s41 = sadd.s32 %s40, 1
    %s42 = scalar_select %p39, %s40, %s41
    %p45 = pneg %p39
    %p46 = scmp.eq.s32.totalorder %s9, 1
    %p47 = por %p45, %p46
    %p48 = scmp.ne.s32.totalorder %s40, %s43
    %p49 = scmp.eq.s32.totalorder %s9, 0
    %p50 = por %p48, %p49
    %p51 = scmp.ne.s32.totalorder %s40, %s43
    %p52 = scmp.eq.s32.totalorder %s14, 1
    %p53 = por %p51, %p52
    %p54 = scmp.ne.s32.totalorder %s43, %s44
    %p55 = scmp.eq.s32.totalorder %s14, 0
    %p56 = por %p54, %p55
    %p57 = scmp.ne.s32.totalorder %s43, %s44
    %p58 = scmp.eq.s32.totalorder %s15, 1
    %p59 = por %p57, %p58
    %p61 = scmp.ne.s32.totalorder %s44, %s60
    %p62 = scmp.eq.s32.totalorder %s15, 0
    %p63 = por %p61, %p62
    %s64 = ssub.s32 %s17, %s31
    %p65 = scmp.eq.s32.totalorder %s64, 0
    %s67 = sadd.s32 %s66, 1
    %s68 = scalar_select %p65, %s66, %s67
    %p71 = pneg %p65
    %p72 = scmp.eq.s32.totalorder %s9, 1
    %p73 = por %p71, %p72
    %p74 = scmp.ne.s32.totalorder %s66, %s69
    %p75 = scmp.eq.s32.totalorder %s9, 0
    %p76 = por %p74, %p75
    %p77 = scmp.ne.s32.totalorder %s66, %s69
    %p78 = scmp.eq.s32.totalorder %s14, 1
    %p79 = por %p77, %p78
    %p80 = scmp.ne.s32.totalorder %s69, %s70
    %p81 = scmp.eq.s32.totalorder %s14, 0
    %p82 = por %p80, %p81
    %p83 = scmp.ne.s32.totalorder %s69, %s70
    %p84 = scmp.eq.s32.totalorder %s15, 1
    %p85 = por %p83, %p84
    %p87 = scmp.ne.s32.totalorder %s70, %s86
    %p88 = scmp.eq.s32.totalorder %s15, 0
    %p89 = por %p87, %p88
    %s90 = ssub.s32 %s17, %s31
    %p91 = scmp.eq.s32.totalorder %s90, 0
    %s93 = sadd.s32 %s92, 1
    %s94 = scalar_select %p91, %s92, %s93
    %p97 = pneg %p91
    %p98 = scmp.eq.s32.totalorder %s9, 1
    %p99 = por %p97, %p98
    %p100 = scmp.ne.s32.totalorder %s92, %s95
    %p101 = scmp.eq.s32.totalorder %s9, 0
    %p102 = por %p100, %p101
    %p103 = scmp.ne.s32.totalorder %s92, %s95
    %p104 = scmp.eq.s32.totalorder %s14, 1
    %p105 = por %p103, %p104
    %p106 = scmp.ne.s32.totalorder %s95, %s96
    %p107 = scmp.eq.s32.totalorder %s14, 0
    %p108 = por %p106, %p107
    %p109 = scmp.ne.s32.totalorder %s95, %s96
    %p110 = scmp.eq.s32.totalorder %s15, 1
    %p111 = por %p109, %p110
    %p113 = scmp.ne.s32.totalorder %s96, %s112
    %p114 = scmp.eq.s32.totalorder %s15, 0
    %p115 = por %p113, %p114
    %s116 = ssub.s32 %s16, %s35
    %s117 = ssub.s32 %s17, %s31
    %s118 = sor.u32 %s116, %s117
    %s119 = ssub.s32 %s18, %s27
    %s120 = sor.u32 %s118, %s119
    %p121 = scmp.eq.s32.totalorder %s120, 0
    %s123 = sadd.s32 %s122, 1
    %s124 = scalar_select %p121, %s122, %s123
    %p127 = pneg %p121
    %p128 = scmp.eq.s32.totalorder %s9, 1
    %p129 = por %p127, %p128
    %p130 = scmp.ne.s32.totalorder %s122, %s125
    %p131 = scmp.eq.s32.totalorder %s9, 0
    %p132 = por %p130, %p131
    %p133 = scmp.ne.s32.totalorder %s122, %s125
    %p134 = scmp.eq.s32.totalorder %s14, 1
    %p135 = por %p133, %p134
    %p136 = scmp.ne.s32.totalorder %s125, %s126
    %p137 = scmp.eq.s32.totalorder %s14, 0
    %p138 = por %p136, %p137
    %p139 = scmp.ne.s32.totalorder %s125, %s126
    %p140 = scmp.eq.s32.totalorder %s15, 1
    %p141 = por %p139, %p140
    %p143 = scmp.ne.s32.totalorder %s126, %s142
    %p144 = scmp.eq.s32.totalorder %s15, 0
    %p145 = por %p143, %p144
    %p146 = scmp.le.s32.totalorder 1, %s9
    %p147 = scmp.lt.s32.totalorder %s9, 3
    %p148 = pnand %p146, %p147
    %p149 = pneg %p148
    // Predicated region
    $region9: #{conv_layer_forward.1} parent=5 // pred_check
      _
    $region10: #{conv_layer_forward.1} parent=5 // pred_check_branch
      %151 = sbr.rel (%p148) target = $region12
    $region11: #{conv_layer_forward.1} parent=5 // pred_region
      %s152 = ssub.s32 %s9, 1
      // Predicated region
      $region13: #{conv_layer_forward.1} parent=11 // pred_check
        %p153 = pneg %p82
      $region14: #{conv_layer_forward.1} parent=11 // pred_check_branch
        %155 = sbr.rel (%p153) target = $region16
      $region15: #{conv_layer_forward.1} parent=11 // pred_region
        %s156 = smul.u32 32, %s20
        %p157 = scmp.lt.s32.totalorder %s156, 31
        %s158 = scalar_select %p157, %s156, 31
        %s159 = smul.addr %s158, 8
        %s160 = scalar_lea.vmem %s1, %s159
        %s161 = smul.u32 32, %s20
      $region16: #{conv_layer_forward.1} parent=11 // pred_fallthru
        _
      // Predicated region
      $region17: #{conv_layer_forward.1} parent=11 // pred_check
        %p162 = pneg %p108
      $region18: #{conv_layer_forward.1} parent=11 // pred_check_branch
        %164 = sbr.rel (%p162) target = $region20
      $region19: #{conv_layer_forward.1} parent=11 // pred_region
        %s165 = smul.u32 32, %s20
        %p166 = scmp.lt.s32.totalorder %s165, 31
        %s167 = scalar_select %p166, %s165, 31
        %s168 = smul.addr %s167, 8
        %s169 = scalar_lea.vmem %s2, %s168
        %s170 = smul.u32 32, %s20
      $region20: #{conv_layer_forward.1} parent=11 // pred_fallthru
        _
    $region12: #{conv_layer_forward.1} parent=5 // pred_fallthru
      _
    %p171 = scmp.lt.s32.totalorder %s9, 2
    // Predicated region
    $region21: #{conv_layer_forward.1} parent=5 // pred_check
      %p172 = pneg %p171
    $region22: #{conv_layer_forward.1} parent=5 // pred_check_branch
      %174 = sbr.rel (%p172) target = $region24
    $region23: #{conv_layer_forward.1} parent=5 // pred_region
      // Predicated region
      $region25: #{conv_layer_forward.1} parent=23 // pred_check
        %p175 = pneg %p50
      $region26: #{conv_layer_forward.1} parent=23 // pred_check_branch
        %177 = sbr.rel (%p175) target = $region28
      $region27: #{conv_layer_forward.1} parent=23 // pred_region
        %p178 = scmp.lt.s32.totalorder %s16, 1
        %s179 = scalar_select %p178, %s16, 1
        %p180 = scmp.lt.s32.totalorder %s18, 0
        %s181 = scalar_select %p180, %s18, 0
        %s182 = smul.addr %s179, 11
        %s183 = sadd.s32 %s181, %s182
        %s184 = smul.addr %s183, 8
        %s185 = scalar_lea.vmem %s0, %s184
      $region28: #{conv_layer_forward.1} parent=23 // pred_fallthru
        _
    $region24: #{conv_layer_forward.1} parent=5 // pred_fallthru
      _
    %p186 = scmp.le.s32.totalorder 1, %s9
    %p187 = scmp.lt.s32.totalorder %s9, 3
    %p188 = pnand %p186, %p187
    %p189 = pneg %p188
    // Predicated region
    $region29: #{conv_layer_forward.1} parent=5 // pred_check
      _
    $region30: #{conv_layer_forward.1} parent=5 // pred_check_branch
      %191 = sbr.rel (%p188) target = $region32
    $region31: #{conv_layer_forward.1} parent=5 // pred_region
      %s192 = ssub.s32 %s9, 1
      %p193 = scmp.lt.s32.totalorder %s19, 1
      %s194 = scalar_select %p193, %s19, 1
      %p195 = scmp.lt.s32.totalorder %s21, 0
      %s196 = scalar_select %p195, %s21, 0
      %s197 = smul.addr %s194, 11
      %s198 = sadd.s32 %s196, %s197
      %s199 = smul.addr %s198, 8
      %s200 = scalar_lea.vmem %s0, %s199
      %p201 = pneg %p56
      %p202 = pneg %p53
      %s203 = smul.u32 32, %s20
      %p204 = scmp.lt.s32.totalorder %s203, 31
      %s205 = scalar_select %p204, %s203, 31
      %s206 = smul.addr %s205, 8
      %s207 = scalar_lea.vmem %s1, %s206
      %p208 = pneg %p82
      %p209 = pneg %p79
      %s210 = smul.u32 32, %s20
      %p211 = scmp.lt.s32.totalorder %s210, 31
      %s212 = scalar_select %p211, %s210, 31
      %s213 = smul.addr %s212, 8
      %s214 = scalar_lea.vmem %s2, %s213
      %p215 = pneg %p108
      %p216 = pneg %p105
      %p217 = pneg %p138
      %p218 = pneg %p135
      %s219 = smul.u32 32, %s20
      %p220 = scmp.lt.s32.totalorder %s19, 1
      %s221 = scalar_select %p220, %s19, 1
      %p222 = scmp.lt.s32.totalorder %s219, 31
      %s223 = scalar_select %p222, %s219, 31
      %p224 = scmp.lt.s32.totalorder %s21, 0
      %s225 = scalar_select %p224, %s21, 0
      %s226 = sadd.s32 %s225, %s223
      %s227 = smul.addr %s221, 32
      %s228 = sadd.s32 %s226, %s227
      %s229 = smul.addr %s228, 8
      %s230 = scalar_lea.vmem %s3, %s229
      %p231 = scmp.lt.s32.totalorder %s19, 1
      %s232 = scalar_select %p231, %s19, 1
      %p233 = scmp.lt.s32.totalorder %s21, 0
      %s234 = scalar_select %p233, %s21, 0
      %s235 = smul.addr %s232, 11
      %s236 = sadd.s32 %s234, %s235
      %s237 = smul.addr %s236, 8
      %s238 = scalar_lea.vmem %s0, %s237
      %s239 = smul.u32 32, %s20
      %p240 = scmp.lt.s32.totalorder %s239, 31
      %s241 = scalar_select %p240, %s239, 31
      %s242 = smul.addr %s241, 8
      %s243 = scalar_lea.vmem %s1, %s242
      %s244 = smul.u32 32, %s20
      %s245 = smul.u32 32, %s20
      %p246 = scmp.lt.s32.totalorder %s245, 31
      %s247 = scalar_select %p246, %s245, 31
      %s248 = smul.addr %s247, 8
      %s249 = scalar_lea.vmem %s2, %s248
      %s250 = smul.u32 32, %s20
      %s251 = smul.u32 32, %s20
      %p252 = scmp.lt.s32.totalorder %s19, 1
      %s253 = scalar_select %p252, %s19, 1
      %p254 = scmp.lt.s32.totalorder %s251, 31
      %s255 = scalar_select %p254, %s251, 31
      %p256 = scmp.lt.s32.totalorder %s21, 0
      %s257 = scalar_select %p256, %s21, 0
      %s258 = sadd.s32 %s257, %s255
      %s259 = smul.addr %s253, 32
      %s260 = sadd.s32 %s258, %s259
      %s261 = smul.addr %s260, 8
      %s262 = scalar_lea.vmem %s3, %s261
      %s263 = smul.u32 32, %s20
      %v264 = vld [vmem:[%s243] sm:$0xff]
      %v265 = vld [vmem:[%s243 + $0x8] sm:$0xff]
      %v266 = vld [vmem:[%s243 + $0x10] sm:$0xff]
      %v267 = vld [vmem:[%s243 + $0x18] sm:$0xff]
      %v268 = vld [vmem:[%s243 + $0x20] sm:$0xff]
      %v269 = vld [vmem:[%s243 + $0x28] sm:$0xff]
      %v270 = vld [vmem:[%s243 + $0x30] sm:$0xff]
      %v271 = vld [vmem:[%s243 + $0x38] sm:$0xff]
      %v272 = vld [vmem:[%s243 + $0x40] sm:$0xff]
      %v273 = vld [vmem:[%s243 + $0x48] sm:$0xff]
      %v274 = vld [vmem:[%s243 + $0x50] sm:$0xff]
      %v275 = vld [vmem:[%s243 + $0x58] sm:$0xff]
      %v276 = vld [vmem:[%s243 + $0x60] sm:$0xff]
      %v277 = vld [vmem:[%s243 + $0x68] sm:$0xff]
      %v278 = vld [vmem:[%s243 + $0x70] sm:$0xff]
      %v279 = vld [vmem:[%s243 + $0x78] sm:$0xff]
      %v280 = vld [vmem:[%s243 + $0x80] sm:$0xff]
      %v281 = vld [vmem:[%s243 + $0x88] sm:$0xff]
      %v282 = vld [vmem:[%s243 + $0x90] sm:$0xff]
      %v283 = vld [vmem:[%s243 + $0x98] sm:$0xff]
      %v284 = vld [vmem:[%s243 + $0xa0] sm:$0xff]
      %v285 = vld [vmem:[%s243 + $0xa8] sm:$0xff]
      %v286 = vld [vmem:[%s243 + $0xb0] sm:$0xff]
      %v287 = vld [vmem:[%s243 + $0xb8] sm:$0xff]
      %v288 = vld [vmem:[%s243 + $0xc0] sm:$0xff]
      %v289 = vld [vmem:[%s243 + $0xc8] sm:$0xff]
      %v290 = vld [vmem:[%s243 + $0xd0] sm:$0xff]
      %v291 = vld [vmem:[%s243 + $0xd8] sm:$0xff]
      %v292 = vld [vmem:[%s243 + $0xe0] sm:$0xff]
      %v293 = vld [vmem:[%s243 + $0xe8] sm:$0xff]
      %v294 = vld [vmem:[%s243 + $0xf0] sm:$0xff]
      %v295 = vld [vmem:[%s243 + $0xf8] sm:$0xff]
      %v296 = vld [vmem:[%s238] sm:$0xff]
      %v297 = vld [vmem:[%s238 + $0x8] sm:$0xff]
      %v298 = vld [vmem:[%s238 + $0x10] sm:$0xff]
      %v299 = vld [vmem:[%s238 + $0x18] sm:$0xff]
      %v300 = vld [vmem:[%s238 + $0x20] sm:$0xff]
      %v301 = vld [vmem:[%s238 + $0x28] sm:$0xff]
      %v302 = vld [vmem:[%s238 + $0x30] sm:$0xff]
      %v303 = vld [vmem:[%s238 + $0x38] sm:$0xff]
      %v304 = vld [vmem:[%s238 + $0x40] sm:$0xff]
      %v305 = vld [vmem:[%s238 + $0x48] sm:$0xff]
      %v306 = vld [vmem:[%s238 + $0x50] sm:$0x1]
      %v307 = vld [vmem:[%s249] sm:$0xff]
      %v308 = vld [vmem:[%s249 + $0x8] sm:$0xff]
      %v309 = vld [vmem:[%s249 + $0x10] sm:$0xff]
      %v310 = vld [vmem:[%s249 + $0x18] sm:$0xff]
      %v311 = vld [vmem:[%s249 + $0x20] sm:$0xff]
      %v312 = vld [vmem:[%s249 + $0x28] sm:$0xff]
      %v313 = vld [vmem:[%s249 + $0x30] sm:$0xff]
      %v314 = vld [vmem:[%s249 + $0x38] sm:$0xff]
      %v315 = vld [vmem:[%s249 + $0x40] sm:$0xff]
      %v316 = vld [vmem:[%s249 + $0x48] sm:$0xff]
      %v317 = vld [vmem:[%s249 + $0x50] sm:$0xff]
      %v318 = vld [vmem:[%s249 + $0x58] sm:$0xff]
      %v319 = vld [vmem:[%s249 + $0x60] sm:$0xff]
      %v320 = vld [vmem:[%s249 + $0x68] sm:$0xff]
      %v321 = vld [vmem:[%s249 + $0x70] sm:$0xff]
      %v322 = vld [vmem:[%s249 + $0x78] sm:$0xff]
      %v323 = vld [vmem:[%s249 + $0x80] sm:$0xff]
      %v324 = vld [vmem:[%s249 + $0x88] sm:$0xff]
      %v325 = vld [vmem:[%s249 + $0x90] sm:$0xff]
      %v326 = vld [vmem:[%s249 + $0x98] sm:$0xff]
      %v327 = vld [vmem:[%s249 + $0xa0] sm:$0xff]
      %v328 = vld [vmem:[%s249 + $0xa8] sm:$0xff]
      %v329 = vld [vmem:[%s249 + $0xb0] sm:$0xff]
      %v330 = vld [vmem:[%s249 + $0xb8] sm:$0xff]
      %v331 = vld [vmem:[%s249 + $0xc0] sm:$0xff]
      %v332 = vld [vmem:[%s249 + $0xc8] sm:$0xff]
      %v333 = vld [vmem:[%s249 + $0xd0] sm:$0xff]
      %v334 = vld [vmem:[%s249 + $0xd8] sm:$0xff]
      %v335 = vld [vmem:[%s249 + $0xe0] sm:$0xff]
      %v336 = vld [vmem:[%s249 + $0xe8] sm:$0xff]
      %v337 = vld [vmem:[%s249 + $0xf0] sm:$0xff]
      %v338 = vld [vmem:[%s249 + $0xf8] sm:$0xff]
      %340 = vset.pattern.permute.xlu0 0
      %341 = vperm.xlu0 %340, %v307
      %v342 = vpop.permute.xlu0 %341
      %345 = vset.pattern.permute.xlu0 0
      %346 = vperm.xlu0 %345, %v308
      %v347 = vpop.permute.xlu0 %346
      %350 = vset.pattern.permute.xlu0 0
      %351 = vperm.xlu0 %350, %v309
      %v352 = vpop.permute.xlu0 %351
      %355 = vset.pattern.permute.xlu0 0
      %356 = vperm.xlu0 %355, %v310
      %v357 = vpop.permute.xlu0 %356
      %360 = vset.pattern.permute.xlu0 0
      %361 = vperm.xlu0 %360, %v311
      %v362 = vpop.permute.xlu0 %361
      %365 = vset.pattern.permute.xlu0 0
      %366 = vperm.xlu0 %365, %v312
      %v367 = vpop.permute.xlu0 %366
      %370 = vset.pattern.permute.xlu0 0
      %371 = vperm.xlu0 %370, %v313
      %v372 = vpop.permute.xlu0 %371
      %375 = vset.pattern.permute.xlu0 0
      %376 = vperm.xlu0 %375, %v314
      %v377 = vpop.permute.xlu0 %376
      %380 = vset.pattern.permute.xlu0 0
      %381 = vperm.xlu0 %380, %v315
      %v382 = vpop.permute.xlu0 %381
      %385 = vset.pattern.permute.xlu0 0
      %386 = vperm.xlu0 %385, %v316
      %v387 = vpop.permute.xlu0 %386
      %390 = vset.pattern.permute.xlu0 0
      %391 = vperm.xlu0 %390, %v317
      %v392 = vpop.permute.xlu0 %391
      %395 = vset.pattern.permute.xlu0 0
      %396 = vperm.xlu0 %395, %v318
      %v397 = vpop.permute.xlu0 %396
      %400 = vset.pattern.permute.xlu0 0
      %401 = vperm.xlu0 %400, %v319
      %v402 = vpop.permute.xlu0 %401
      %405 = vset.pattern.permute.xlu0 0
      %406 = vperm.xlu0 %405, %v320
      %v407 = vpop.permute.xlu0 %406
      %410 = vset.pattern.permute.xlu0 0
      %411 = vperm.xlu0 %410, %v321
      %v412 = vpop.permute.xlu0 %411
      %415 = vset.pattern.permute.xlu0 0
      %416 = vperm.xlu0 %415, %v322
      %v417 = vpop.permute.xlu0 %416
      %420 = vset.pattern.permute.xlu0 0
      %421 = vperm.xlu0 %420, %v323
      %v422 = vpop.permute.xlu0 %421
      %425 = vset.pattern.permute.xlu0 0
      %426 = vperm.xlu0 %425, %v324
      %v427 = vpop.permute.xlu0 %426
      %430 = vset.pattern.permute.xlu0 0
      %431 = vperm.xlu0 %430, %v325
      %v432 = vpop.permute.xlu0 %431
      %435 = vset.pattern.permute.xlu0 0
      %436 = vperm.xlu0 %435, %v326
      %v437 = vpop.permute.xlu0 %436
      %440 = vset.pattern.permute.xlu0 0
      %441 = vperm.xlu0 %440, %v327
      %v442 = vpop.permute.xlu0 %441
      %445 = vset.pattern.permute.xlu0 0
      %446 = vperm.xlu0 %445, %v328
      %v447 = vpop.permute.xlu0 %446
      %450 = vset.pattern.permute.xlu0 0
      %451 = vperm.xlu0 %450, %v329
      %v452 = vpop.permute.xlu0 %451
      %455 = vset.pattern.permute.xlu0 0
      %456 = vperm.xlu0 %455, %v330
      %v457 = vpop.permute.xlu0 %456
      %460 = vset.pattern.permute.xlu0 0
      %461 = vperm.xlu0 %460, %v331
      %v462 = vpop.permute.xlu0 %461
      %465 = vset.pattern.permute.xlu0 0
      %466 = vperm.xlu0 %465, %v332
      %v467 = vpop.permute.xlu0 %466
      %470 = vset.pattern.permute.xlu0 0
      %471 = vperm.xlu0 %470, %v333
      %v472 = vpop.permute.xlu0 %471
      %475 = vset.pattern.permute.xlu0 0
      %476 = vperm.xlu0 %475, %v334
      %v477 = vpop.permute.xlu0 %476
      %480 = vset.pattern.permute.xlu0 0
      %481 = vperm.xlu0 %480, %v335
      %v482 = vpop.permute.xlu0 %481
      %485 = vset.pattern.permute.xlu0 0
      %486 = vperm.xlu0 %485, %v336
      %v487 = vpop.permute.xlu0 %486
      %490 = vset.pattern.permute.xlu0 0
      %491 = vperm.xlu0 %490, %v337
      %v492 = vpop.permute.xlu0 %491
      %495 = vset.pattern.permute.xlu0 0
      %496 = vperm.xlu0 %495, %v338
      %v497 = vpop.permute.xlu0 %496
      %vm499 = vcmask 662528
      %v501 = vsel %vm499, %v264, 0
      %v504 = vsel %vm499, %v265, 0
      %v507 = vsel %vm499, %v266, 0
      %v510 = vsel %vm499, %v267, 0
      %v513 = vsel %vm499, %v268, 0
      %v516 = vsel %vm499, %v269, 0
      %v519 = vsel %vm499, %v270, 0
      %v522 = vsel %vm499, %v271, 0
      %v525 = vsel %vm499, %v272, 0
      %v528 = vsel %vm499, %v273, 0
      %v531 = vsel %vm499, %v274, 0
      %v534 = vsel %vm499, %v275, 0
      %v537 = vsel %vm499, %v276, 0
      %v540 = vsel %vm499, %v277, 0
      %v543 = vsel %vm499, %v278, 0
      %v546 = vsel %vm499, %v279, 0
      %v549 = vsel %vm499, %v280, 0
      %v552 = vsel %vm499, %v281, 0
      %v555 = vsel %vm499, %v282, 0
      %v558 = vsel %vm499, %v283, 0
      %v561 = vsel %vm499, %v284, 0
      %v564 = vsel %vm499, %v285, 0
      %v567 = vsel %vm499, %v286, 0
      %v570 = vsel %vm499, %v287, 0
      %v573 = vsel %vm499, %v288, 0
      %v576 = vsel %vm499, %v289, 0
      %v579 = vsel %vm499, %v290, 0
      %v582 = vsel %vm499, %v291, 0
      %v585 = vsel %vm499, %v292, 0
      %v588 = vsel %vm499, %v293, 0
      %v591 = vsel %vm499, %v294, 0
      %v594 = vsel %vm499, %v295, 0
      %vm596 = vcmask 1040384
      %v598 = vsel %vm596, %v306, 0
      %600 = vmatprep.subr.mxu0 0.0
      %601 = vmatpush1.msra.mxu0 %v296
      %602 = vmatprep.subr.mxu0 0.0
      %603 = vmatpush1.msra.mxu0 %v297
      %604 = vmatprep.subr.mxu0 0.0
      %605 = vmatpush1.msra.mxu0 %v298
      %606 = vmatprep.subr.mxu0 0.0
      %607 = vmatpush1.msra.mxu0 %v299
      %608 = vmatprep.subr.mxu0 0.0
      %609 = vmatpush1.msra.mxu0 %v300
      %610 = vmatprep.subr.mxu0 0.0
      %611 = vmatpush1.msra.mxu0 %v301
      %612 = vmatprep.subr.mxu0 0.0
      %613 = vmatpush1.msra.mxu0 %v302
      %614 = vmatprep.subr.mxu0 0.0
      %615 = vmatpush1.msra.mxu0 %v303
      %616 = vmatprep.subr.mxu0 0.0
      %617 = vmatpush1.msra.mxu0 %v304
      %618 = vmatprep.subr.mxu0 0.0
      %619 = vmatpush1.msra.mxu0 %v305
      %620 = vmatprep.subr.mxu0 0.0
      %621 = vmatpush1.msra.mxu0 %v598
      %622 = vmatprep.subr.mxu0 0.0
      %623 = vmatpush1.msra.mxu0 0.0
      %624 = vmatprep.subr.mxu0 0.0
      %625 = vmatpush1.msra.mxu0 0.0
      %626 = vmatprep.subr.mxu0 0.0
      %627 = vmatpush1.msra.mxu0 0.0
      %628 = vmatprep.subr.mxu0 0.0
      %629 = vmatpush1.msra.mxu0 0.0
      %630 = vmatprep.subr.mxu0 0.0
      %631 = vmatpush1.msra.mxu0 0.0
      %632 = vmatprep.subr.mxu0 0.0
      %633 = vmatpush1.msra.mxu0 0.0
      %634 = vmatprep.subr.mxu0 0.0
      %635 = vmatpush1.msra.mxu0 0.0
      %636 = vmatprep.subr.mxu0 0.0
      %637 = vmatpush1.msra.mxu0 0.0
      %638 = vmatprep.subr.mxu0 0.0
      %639 = vmatpush1.msra.mxu0 0.0
      %640 = vmatprep.subr.mxu0 0.0
      %641 = vmatpush1.msra.mxu0 0.0
      %642 = vmatprep.subr.mxu0 0.0
      %643 = vmatpush1.msra.mxu0 0.0
      %644 = vmatprep.subr.mxu0 0.0
      %645 = vmatpush1.msra.mxu0 0.0
      %646 = vmatprep.subr.mxu0 0.0
      %647 = vmatpush1.msra.mxu0 0.0
      %648 = vmatprep.subr.mxu0 0.0
      %649 = vmatpush1.msra.mxu0 0.0
      %650 = vmatprep.subr.mxu0 0.0
      %651 = vmatpush1.msra.mxu0 0.0
      %652 = vmatprep.subr.mxu0 0.0
      %653 = vmatpush1.msra.mxu0 0.0
      %654 = vmatprep.subr.mxu0 0.0
      %655 = vmatpush1.msra.mxu0 0.0
      %656 = vmatprep.subr.mxu0 0.0
      %657 = vmatpush1.msra.mxu0 0.0
      %658 = vmatprep.subr.mxu0 0.0
      %659 = vmatpush1.msra.mxu0 0.0
      %660 = vmatprep.subr.mxu0 0.0
      %661 = vmatpush1.msra.mxu0 0.0
      %662 = vmatprep.subr.mxu0 0.0
      %663 = vmatpush1.msra.mxu0 0.0
      %664 = vmatprep.mubr.f32.mxu0 0.0
      %665 = vmatmul.mubr.f32.gmra.mrb[0].mxu0 %v501
      %v666 = vpop.f32.mrb[0].mxu0
      %v667 = vadd.f32 %v342, %v666
      %v668 = vpop.f32.mrb[0].mxu0
      %669 = vmatprep.mubr.f32.mxu0 0.0
      %670 = vmatmul.mubr.f32.gmra.mrb[0].mxu0 %v504
      %v671 = vpop.f32.mrb[0].mxu0
      %v672 = vadd.f32 %v347, %v671
      %v673 = vpop.f32.mrb[0].mxu0
      %674 = vmatprep.mubr.f32.mxu0 0.0
      %675 = vmatmul.mubr.f32.gmra.mrb[0].mxu0 %v507
      %v676 = vpop.f32.mrb[0].mxu0
      %v677 = vadd.f32 %v352, %v676
      %v678 = vpop.f32.mrb[0].mxu0
      %679 = vmatprep.mubr.f32.mxu0 0.0
      %680 = vmatmul.mubr.f32.gmra.mrb[0].mxu0 %v510
      %v681 = vpop.f32.mrb[0].mxu0
      %v682 = vadd.f32 %v357, %v681
      %v683 = vpop.f32.mrb[0].mxu0
      %684 = vmatprep.mubr.f32.mxu0 0.0
      %685 = vmatmul.mubr.f32.gmra.mrb[0].mxu0 %v513
      %v686 = vpop.f32.mrb[0].mxu0
      %v687 = vadd.f32 %v362, %v686
      %v688 = vpop.f32.mrb[0].mxu0
      %689 = vmatprep.mubr.f32.mxu0 0.0
      %690 = vmatmul.mubr.f32.gmra.mrb[0].mxu0 %v516
      %v691 = vpop.f32.mrb[0].mxu0
      %v692 = vadd.f32 %v367, %v691
      %v693 = vpop.f32.mrb[0].mxu0
      %694 = vmatprep.mubr.f32.mxu0 0.0
      %695 = vmatmul.mubr.f32.gmra.mrb[0].mxu0 %v519
      %v696 = vpop.f32.mrb[0].mxu0
      %v697 = vadd.f32 %v372, %v696
      %v698 = vpop.f32.mrb[0].mxu0
      %699 = vmatprep.mubr.f32.mxu0 0.0
      %700 = vmatmul.mubr.f32.gmra.mrb[0].mxu0 %v522
      %v701 = vpop.f32.mrb[0].mxu0
      %v702 = vadd.f32 %v377, %v701
      %v703 = vpop.f32.mrb[0].mxu0
      %704 = vmatprep.mubr.f32.mxu0 0.0
      %705 = vmatmul.mubr.f32.gmra.mrb[0].mxu0 %v525
      %v706 = vpop.f32.mrb[0].mxu0
      %v707 = vadd.f32 %v382, %v706
      %v708 = vpop.f32.mrb[0].mxu0
      %709 = vmatprep.mubr.f32.mxu0 0.0
      %710 = vmatmul.mubr.f32.gmra.mrb[0].mxu0 %v528
      %v711 = vpop.f32.mrb[0].mxu0
      %v712 = vadd.f32 %v387, %v711
      %v713 = vpop.f32.mrb[0].mxu0
      %714 = vmatprep.mubr.f32.mxu0 0.0
      %715 = vmatmul.mubr.f32.gmra.mrb[0].mxu0 %v531
      %v716 = vpop.f32.mrb[0].mxu0
      %v717 = vadd.f32 %v392, %v716
      %v718 = vpop.f32.mrb[0].mxu0
      %719 = vmatprep.mubr.f32.mxu0 0.0
      %720 = vmatmul.mubr.f32.gmra.mrb[0].mxu0 %v534
      %v721 = vpop.f32.mrb[0].mxu0
      %v722 = vadd.f32 %v397, %v721
      %v723 = vpop.f32.mrb[0].mxu0
      %724 = vmatprep.mubr.f32.mxu0 0.0
      %725 = vmatmul.mubr.f32.gmra.mrb[0].mxu0 %v537
      %v726 = vpop.f32.mrb[0].mxu0
      %v727 = vadd.f32 %v402, %v726
      %v728 = vpop.f32.mrb[0].mxu0
      %729 = vmatprep.mubr.f32.mxu0 0.0
      %730 = vmatmul.mubr.f32.gmra.mrb[0].mxu0 %v540
      %v731 = vpop.f32.mrb[0].mxu0
      %v732 = vadd.f32 %v407, %v731
      %v733 = vpop.f32.mrb[0].mxu0
      %734 = vmatprep.mubr.f32.mxu0 0.0
      %735 = vmatmul.mubr.f32.gmra.mrb[0].mxu0 %v543
      %v736 = vpop.f32.mrb[0].mxu0
      %v737 = vadd.f32 %v412, %v736
      %v738 = vpop.f32.mrb[0].mxu0
      %739 = vmatprep.mubr.f32.mxu0 0.0
      %740 = vmatmul.mubr.f32.gmra.mrb[0].mxu0 %v546
      %v741 = vpop.f32.mrb[0].mxu0
      %v742 = vadd.f32 %v417, %v741
      %v743 = vpop.f32.mrb[0].mxu0
      %744 = vmatprep.mubr.f32.mxu0 0.0
      %745 = vmatmul.mubr.f32.gmra.mrb[0].mxu0 %v549
      %v746 = vpop.f32.mrb[0].mxu0
      %v747 = vadd.f32 %v422, %v746
      %v748 = vpop.f32.mrb[0].mxu0
      %749 = vmatprep.mubr.f32.mxu0 0.0
      %750 = vmatmul.mubr.f32.gmra.mrb[0].mxu0 %v552
      %v751 = vpop.f32.mrb[0].mxu0
      %v752 = vadd.f32 %v427, %v751
      %v753 = vpop.f32.mrb[0].mxu0
      %754 = vmatprep.mubr.f32.mxu0 0.0
      %755 = vmatmul.mubr.f32.gmra.mrb[0].mxu0 %v555
      %v756 = vpop.f32.mrb[0].mxu0
      %v757 = vadd.f32 %v432, %v756
      %v758 = vpop.f32.mrb[0].mxu0
      %759 = vmatprep.mubr.f32.mxu0 0.0
      %760 = vmatmul.mubr.f32.gmra.mrb[0].mxu0 %v558
      %v761 = vpop.f32.mrb[0].mxu0
      %v762 = vadd.f32 %v437, %v761
      %v763 = vpop.f32.mrb[0].mxu0
      %764 = vmatprep.mubr.f32.mxu0 0.0
      %765 = vmatmul.mubr.f32.gmra.mrb[0].mxu0 %v561
      %v766 = vpop.f32.mrb[0].mxu0
      %v767 = vadd.f32 %v442, %v766
      %v768 = vpop.f32.mrb[0].mxu0
      %769 = vmatprep.mubr.f32.mxu0 0.0
      %770 = vmatmul.mubr.f32.gmra.mrb[0].mxu0 %v564
      %v771 = vpop.f32.mrb[0].mxu0
      %v772 = vadd.f32 %v447, %v771
      %v773 = vpop.f32.mrb[0].mxu0
      %774 = vmatprep.mubr.f32.mxu0 0.0
      %775 = vmatmul.mubr.f32.gmra.mrb[0].mxu0 %v567
      %v776 = vpop.f32.mrb[0].mxu0
      %v777 = vadd.f32 %v452, %v776
      %v778 = vpop.f32.mrb[0].mxu0
      %779 = vmatprep.mubr.f32.mxu0 0.0
      %780 = vmatmul.mubr.f32.gmra.mrb[0].mxu0 %v570
      %v781 = vpop.f32.mrb[0].mxu0
      %v782 = vadd.f32 %v457, %v781
      %v783 = vpop.f32.mrb[0].mxu0
      %784 = vmatprep.mubr.f32.mxu0 0.0
      %785 = vmatmul.mubr.f32.gmra.mrb[0].mxu0 %v573
      %v786 = vpop.f32.mrb[0].mxu0
      %v787 = vadd.f32 %v462, %v786
      %v788 = vpop.f32.mrb[0].mxu0
      %789 = vmatprep.mubr.f32.mxu0 0.0
      %790 = vmatmul.mubr.f32.gmra.mrb[0].mxu0 %v576
      %v791 = vpop.f32.mrb[0].mxu0
      %v792 = vadd.f32 %v467, %v791
      %v793 = vpop.f32.mrb[0].mxu0
      %794 = vmatprep.mubr.f32.mxu0 0.0
      %795 = vmatmul.mubr.f32.gmra.mrb[0].mxu0 %v579
      %v796 = vpop.f32.mrb[0].mxu0
      %v797 = vadd.f32 %v472, %v796
      %v798 = vpop.f32.mrb[0].mxu0
      %799 = vmatprep.mubr.f32.mxu0 0.0
      %800 = vmatmul.mubr.f32.gmra.mrb[0].mxu0 %v582
      %v801 = vpop.f32.mrb[0].mxu0
      %v802 = vadd.f32 %v477, %v801
      %v803 = vpop.f32.mrb[0].mxu0
      %804 = vmatprep.mubr.f32.mxu0 0.0
      %805 = vmatmul.mubr.f32.gmra.mrb[0].mxu0 %v585
      %v806 = vpop.f32.mrb[0].mxu0
      %v807 = vadd.f32 %v482, %v806
      %v808 = vpop.f32.mrb[0].mxu0
      %809 = vmatprep.mubr.f32.mxu0 0.0
      %810 = vmatmul.mubr.f32.gmra.mrb[0].mxu0 %v588
      %v811 = vpop.f32.mrb[0].mxu0
      %v812 = vadd.f32 %v487, %v811
      %v813 = vpop.f32.mrb[0].mxu0
      %814 = vmatprep.mubr.f32.mxu0 0.0
      %815 = vmatmul.mubr.f32.gmra.mrb[0].mxu0 %v591
      %v816 = vpop.f32.mrb[0].mxu0
      %v817 = vadd.f32 %v492, %v816
      %v818 = vpop.f32.mrb[0].mxu0
      %819 = vmatprep.mubr.f32.mxu0 0.0
      %820 = vmatmul.mubr.f32.gmra.mrb[0].mxu0 %v594
      %v821 = vpop.f32.mrb[0].mxu0
      %v822 = vadd.f32 %v497, %v821
      %v823 = vpop.f32.mrb[0].mxu0
      %824 = vdwg.mxu0
      %v825 = vmax.f32 %v667, 0.0
      %v826 = vmax.f32 %v672, 0.0
      %v827 = vmax.f32 %v677, 0.0
      %v828 = vmax.f32 %v682, 0.0
      %v829 = vmax.f32 %v687, 0.0
      %v830 = vmax.f32 %v692, 0.0
      %v831 = vmax.f32 %v697, 0.0
      %v832 = vmax.f32 %v702, 0.0
      %v833 = vmax.f32 %v707, 0.0
      %v834 = vmax.f32 %v712, 0.0
      %v835 = vmax.f32 %v717, 0.0
      %v836 = vmax.f32 %v722, 0.0
      %v837 = vmax.f32 %v727, 0.0
      %v838 = vmax.f32 %v732, 0.0
      %v839 = vmax.f32 %v737, 0.0
      %v840 = vmax.f32 %v742, 0.0
      %v841 = vmax.f32 %v747, 0.0
      %v842 = vmax.f32 %v752, 0.0
      %v843 = vmax.f32 %v757, 0.0
      %v844 = vmax.f32 %v762, 0.0
      %v845 = vmax.f32 %v767, 0.0
      %v846 = vmax.f32 %v772, 0.0
      %v847 = vmax.f32 %v777, 0.0
      %v848 = vmax.f32 %v782, 0.0
      %v849 = vmax.f32 %v787, 0.0
      %v850 = vmax.f32 %v792, 0.0
      %v851 = vmax.f32 %v797, 0.0
      %v852 = vmax.f32 %v802, 0.0
      %v853 = vmax.f32 %v807, 0.0
      %v854 = vmax.f32 %v812, 0.0
      %v855 = vmax.f32 %v817, 0.0
      %v856 = vmax.f32 %v822, 0.0
      %vm857 = vcmask 523264
      %858 = vst.msk [vmem:[%s262] sm:$0xff] %vm857, %v825
      %859 = vst.msk [vmem:[%s262 + $0x8] sm:$0xff] %vm857, %v826
      %860 = vst.msk [vmem:[%s262 + $0x10] sm:$0xff] %vm857, %v827
      %861 = vst.msk [vmem:[%s262 + $0x18] sm:$0xff] %vm857, %v828
      %862 = vst.msk [vmem:[%s262 + $0x20] sm:$0xff] %vm857, %v829
      %863 = vst.msk [vmem:[%s262 + $0x28] sm:$0xff] %vm857, %v830
      %864 = vst.msk [vmem:[%s262 + $0x30] sm:$0xff] %vm857, %v831
      %865 = vst.msk [vmem:[%s262 + $0x38] sm:$0xff] %vm857, %v832
      %866 = vst.msk [vmem:[%s262 + $0x40] sm:$0xff] %vm857, %v833
      %867 = vst.msk [vmem:[%s262 + $0x48] sm:$0xff] %vm857, %v834
      %868 = vst.msk [vmem:[%s262 + $0x50] sm:$0xff] %vm857, %v835
      %869 = vst.msk [vmem:[%s262 + $0x58] sm:$0xff] %vm857, %v836
      %870 = vst.msk [vmem:[%s262 + $0x60] sm:$0xff] %vm857, %v837
      %871 = vst.msk [vmem:[%s262 + $0x68] sm:$0xff] %vm857, %v838
      %872 = vst.msk [vmem:[%s262 + $0x70] sm:$0xff] %vm857, %v839
      %873 = vst.msk [vmem:[%s262 + $0x78] sm:$0xff] %vm857, %v840
      %874 = vst.msk [vmem:[%s262 + $0x80] sm:$0xff] %vm857, %v841
      %875 = vst.msk [vmem:[%s262 + $0x88] sm:$0xff] %vm857, %v842
      %876 = vst.msk [vmem:[%s262 + $0x90] sm:$0xff] %vm857, %v843
      %877 = vst.msk [vmem:[%s262 + $0x98] sm:$0xff] %vm857, %v844
      %878 = vst.msk [vmem:[%s262 + $0xa0] sm:$0xff] %vm857, %v845
      %879 = vst.msk [vmem:[%s262 + $0xa8] sm:$0xff] %vm857, %v846
      %880 = vst.msk [vmem:[%s262 + $0xb0] sm:$0xff] %vm857, %v847
      %881 = vst.msk [vmem:[%s262 + $0xb8] sm:$0xff] %vm857, %v848
      %882 = vst.msk [vmem:[%s262 + $0xc0] sm:$0xff] %vm857, %v849
      %883 = vst.msk [vmem:[%s262 + $0xc8] sm:$0xff] %vm857, %v850
      %884 = vst.msk [vmem:[%s262 + $0xd0] sm:$0xff] %vm857, %v851
      %885 = vst.msk [vmem:[%s262 + $0xd8] sm:$0xff] %vm857, %v852
      %886 = vst.msk [vmem:[%s262 + $0xe0] sm:$0xff] %vm857, %v853
      %887 = vst.msk [vmem:[%s262 + $0xe8] sm:$0xff] %vm857, %v854
      %888 = vst.msk [vmem:[%s262 + $0xf0] sm:$0xff] %vm857, %v855
      %889 = vst.msk [vmem:[%s262 + $0xf8] sm:$0xff] %vm857, %v856
      %s890 = smul.u32 32, %s20
      %p891 = scmp.lt.s32.totalorder %s19, 1
      %s892 = scalar_select %p891, %s19, 1
      %p893 = scmp.lt.s32.totalorder %s890, 31
      %s894 = scalar_select %p893, %s890, 31
      %p895 = scmp.lt.s32.totalorder %s21, 0
      %s896 = scalar_select %p895, %s21, 0
      %s897 = sadd.s32 %s896, %s894
      %s898 = smul.addr %s892, 32
      %s899 = sadd.s32 %s897, %s898
      %s900 = smul.addr %s899, 8
      %s901 = scalar_lea.vmem %s3, %s900
      // Predicated region
      $region33: #{conv_layer_forward.1} parent=31 // pred_check
        %p902 = pneg %p135
      $region34: #{conv_layer_forward.1} parent=31 // pred_check_branch
        %904 = sbr.rel (%p902) target = $region36
      $region35: #{conv_layer_forward.1} parent=31 // pred_region
        %s905 = smul.u32 32, %s20
      $region36: #{conv_layer_forward.1} parent=31 // pred_fallthru
        _
    $region32: #{conv_layer_forward.1} parent=5 // pred_fallthru
      _
    %p906 = scmp.le.s32.totalorder 2, %s9
    // Predicated region
    $region37: #{conv_layer_forward.1} parent=5 // pred_check
      %p907 = pneg %p906
    $region38: #{conv_layer_forward.1} parent=5 // pred_check_branch
      %909 = sbr.rel (%p907) target = $region40
    $region39: #{conv_layer_forward.1} parent=5 // pred_region
      %s910 = ssub.s32 %s9, 2
      // Predicated region
      $region41: #{conv_layer_forward.1} parent=39 // pred_check
        %p911 = pneg %p141
      $region42: #{conv_layer_forward.1} parent=39 // pred_check_branch
        %913 = sbr.rel (%p911) target = $region44
      $region43: #{conv_layer_forward.1} parent=39 // pred_region
        %s914 = smul.u32 32, %s23
        %p915 = scmp.lt.s32.totalorder %s22, 1
        %s916 = scalar_select %p915, %s22, 1
        %p917 = scmp.lt.s32.totalorder %s914, 31
        %s918 = scalar_select %p917, %s914, 31
        %p919 = scmp.lt.s32.totalorder %s24, 0
        %s920 = scalar_select %p919, %s24, 0
        %s921 = sadd.s32 %s920, %s918
        %s922 = smul.addr %s916, 32
        %s923 = sadd.s32 %s921, %s922
        %s924 = smul.addr %s923, 8
        %s925 = scalar_lea.vmem %s3, %s924
      $region44: #{conv_layer_forward.1} parent=39 // pred_fallthru
        _
    $region40: #{conv_layer_forward.1} parent=5 // pred_fallthru
      _
  $region6: #{conv_layer_forward.1} parent=0 // loop_footer
    %s13 = sadd.s32 1, %s9
  $region7: #{conv_layer_forward.1} parent=0 // loop_footer_branch
    %8 = sbr.rel target = $region3
  $region8: #{conv_layer_forward.1} parent=0 // loop_exit
    _

</llo_original>
